<compile_context>
chip_gen: v7x
topology: tpu7x:2x2x1
jax: 0.10.0
libtpu: 0.0.40
codegen_flags: <defaults>
</compile_context>

<pallas_src>
import math

import jax
import jax.numpy as jnp
from jax import lax
from jax.experimental import pallas as pl
from jax.experimental.pallas import tpu as pltpu

_LOG2PI = math.log(2.0 * math.pi)


def _gaussian_prior_logprob_kernel(const_ref, w1_ref, w2_ref, z_ref, logp_ref):
    """One batch tile of log_prob under N(mean, diag(exp(logvar)))."""
    z = z_ref[...].astype(jnp.float32)               # (TB, M); upcast if bf16
    dn = (((1,), (1,)), ((), ()))                     # contract the M axis

    # Two skinny MXU contractions; results are already lane-dense (1, TB).
    q1 = lax.dot_general(w1_ref[...], z * z, dn,
                         preferred_element_type=jnp.float32,
                         precision=lax.Precision.HIGHEST)
    q2 = lax.dot_general(w2_ref[...], z, dn,
                         preferred_element_type=jnp.float32,
                         precision=lax.Precision.HIGHEST)

    logp_ref[...] = q1 + q2 + const_ref[0]            # (1, TB), unmasked vst


def _round_up(x, m):
    return ((x + m - 1) // m) * m


def _choose_batch_tile(B, M, itemsize):
    """Pick the batch tile TB and padded batch.

    TB is sized so a z block is ~2 MiB (amortizes per-grid-step overhead while
    keeping double-buffered VMEM use tiny), rounded to 128 for a lane-dense
    (1, TB) log_prob row, and capped so mid/large batches produce >= 2 grid
    steps (lights up both TensorCores on v7x)."""
    if B < 256:
        sub = 16 if itemsize == 2 else 8              # bf16 sublane packing
        tb = max(_round_up(B, sub), sub)              # single full-extent tile
        return tb, tb
    target_bytes = 2 * 1024 * 1024
    tb = _round_up(max(target_bytes // (itemsize * M), 1), 128)
    tb = min(tb, _round_up(pl.cdiv(B, 2), 128))       # >= 2 grid steps
    tb = max(tb, 128)
    return tb, _round_up(B, tb)


def gaussian_prior_forward(mean, logvar, z):
    """mean, logvar: (M,) prior parameters; z: (B, M) latents (f32 or bf16).

    Returns (scale, log_prob) with shapes (M,) and (B,), float32 — the
    materialized outputs of GaussianPrior.forward()'s distribution object."""
    mean = mean.astype(jnp.float32)
    logvar = logvar.astype(jnp.float32)
    M = mean.shape[0]
    B = z.shape[0]

    # O(M) parameter math: once, in the wrapper, not once per grid step.
    scale = jnp.exp(0.5 * logvar)                     # Normal scale, (M,)
    inv_var = jnp.exp(-logvar)                        # no division, no overflow
    w1 = (-0.5 * inv_var).reshape(1, M)
    w2 = (mean * inv_var).reshape(1, M)
    const = (-0.5 * (jnp.sum(mean * mean * inv_var)
                     + jnp.sum(logvar) + M * _LOG2PI)).reshape(1)

    tb, b_pad = _choose_batch_tile(B, M, jnp.dtype(z.dtype).itemsize)
    num_tiles = b_pad // tb
    if b_pad != B:
        z = jnp.pad(z, ((0, b_pad - B), (0, 0)))

    logp_row = pl.pallas_call(
        _gaussian_prior_logprob_kernel,
        out_shape=jax.ShapeDtypeStruct((1, b_pad), jnp.float32),
        grid=(num_tiles,),
        in_specs=[
            pl.BlockSpec(memory_space=pltpu.MemorySpace.SMEM),  # const scalar
            pl.BlockSpec((1, M), lambda i: (0, 0)),             # w1 (reused)
            pl.BlockSpec((1, M), lambda i: (0, 0)),             # w2 (reused)
            pl.BlockSpec((tb, M), lambda i: (i, 0)),            # z, batch-tiled
        ],
        out_specs=pl.BlockSpec((1, tb), lambda i: (0, i)),      # lane-dense row
        compiler_params=pltpu.CompilerParams(
            dimension_semantics=("parallel",),
            vmem_limit_bytes=32 * 1024 * 1024,
        ),
    )(const, w1, w2, z)

    return scale, logp_row[0, :B]


if __name__ == "__main__":
    M = 32   # latent dim of the prior (module parameter size)
    B = 8    # number of latent points to evaluate log_prob on

    key = jax.random.PRNGKey(0)
    kz, km, kv = jax.random.split(key, 3)

    # GaussianPrior.__init__ zero-initializes both (non-trainable) parameters.
    mean = jnp.zeros((M,), dtype=jnp.float32)
    logvar = jnp.zeros((M,), dtype=jnp.float32)
    z = jax.random.normal(kz, (B, M), dtype=jnp.float32)

    def ref(mean, logvar, z):
        ref_scale = jnp.exp(0.5 * logvar)
        ref_logp = jnp.sum(
            -0.5 * ((z - mean) ** 2 / jnp.exp(logvar) + logvar + _LOG2PI),
            axis=-1)
        return ref_scale, ref_logp

    scale, logp = gaussian_prior_forward(mean, logvar, z)
    jax.block_until_ready((scale, logp))
    r_scale, r_logp = ref(mean, logvar, z)
    assert scale.shape == (M,) and logp.shape == (B,)
    assert jnp.allclose(scale, r_scale, atol=1e-5, rtol=1e-5)
    assert jnp.allclose(logp, r_logp, atol=1e-3, rtol=1e-5)

    # Exercise the non-zero-parameter path (w2 / const terms) as well.
    mean2 = 0.3 * jax.random.normal(km, (M,), dtype=jnp.float32)
    logvar2 = 0.2 * jax.random.normal(kv, (M,), dtype=jnp.float32)
    scale2, logp2 = gaussian_prior_forward(mean2, logvar2, z)
    jax.block_until_ready((scale2, logp2))
    r_scale2, r_logp2 = ref(mean2, logvar2, z)
    assert jnp.allclose(scale2, r_scale2, atol=1e-5, rtol=1e-5)
    assert jnp.allclose(logp2, r_logp2, atol=1e-3, rtol=1e-5)

    print("KERNEL_OK")
</pallas_src>

<mosaic_0001>
module attributes {stable_mosaic.version = 11 : i64} {
  func.func @_gaussian_prior_logprob_kernel(%arg0: i32, %arg1: memref<1xf32, #tpu.memory_space<smem>>, %arg2: memref<1x32xf32, #tpu.memory_space<vmem>>, %arg3: memref<1x32xf32, #tpu.memory_space<vmem>>, %arg4: memref<8x32xf32, #tpu.memory_space<vmem>>, %arg5: memref<1x8xf32, #tpu.memory_space<vmem>>) attributes {dimension_semantics = [#tpu.dimension_semantics<parallel>], iteration_bounds = array<i64: 1>, scalar_prefetch = 0 : i64, scratch_operands = 0 : i64, tpu.core_type = #tpu.core_type<tc>, window_params = [{transform_indices = @transform_0, window_bounds = array<i64: 1>}, {pipeline_mode = #tpu.pipeline_mode<synchronous>, transform_indices = @transform_1, window_bounds = array<i64: 1, 32>}, {pipeline_mode = #tpu.pipeline_mode<synchronous>, transform_indices = @transform_2, window_bounds = array<i64: 1, 32>}, {transform_indices = @transform_3, window_bounds = array<i64: 8, 32>}, {transform_indices = @transform_4, window_bounds = array<i64: 1, 8>}]} {
    %c0 = arith.constant 0 : index
    %c0_0 = arith.constant 0 : index
    %0 = vector.load %arg4[%c0, %c0_0] : memref<8x32xf32, #tpu.memory_space<vmem>>, vector<8x32xf32>
    %c0_1 = arith.constant 0 : index
    %c0_2 = arith.constant 0 : index
    %1 = vector.load %arg2[%c0_1, %c0_2] : memref<1x32xf32, #tpu.memory_space<vmem>>, vector<1x32xf32>
    %2 = arith.mulf %0, %0 : vector<8x32xf32>
    %cst = arith.constant dense<0.000000e+00> : vector<1x8xf32>
    %3 = tpu.matmul %1, %2, %cst {dimension_numbers = #tpu.dot_dimension_numbers<[1], [1], [0], [0], [0, 0, 1, 0], [], []>, precision = #tpu.contract_precision<fp32>} : vector<1x32xf32>, vector<8x32xf32>, vector<1x8xf32> -> vector<1x8xf32>
    %c0_3 = arith.constant 0 : index
    %c0_4 = arith.constant 0 : index
    %4 = vector.load %arg3[%c0_3, %c0_4] : memref<1x32xf32, #tpu.memory_space<vmem>>, vector<1x32xf32>
    %cst_5 = arith.constant dense<0.000000e+00> : vector<1x8xf32>
    %5 = tpu.matmul %4, %0, %cst_5 {dimension_numbers = #tpu.dot_dimension_numbers<[1], [1], [0], [0], [0, 0, 1, 0], [], []>, precision = #tpu.contract_precision<fp32>} : vector<1x32xf32>, vector<8x32xf32>, vector<1x8xf32> -> vector<1x8xf32>
    %6 = arith.addf %3, %5 : vector<1x8xf32>
    %c0_6 = arith.constant 0 : index
    %7 = memref.load %arg1[%c0_6] : memref<1xf32, #tpu.memory_space<smem>>
    %8 = vector.broadcast %7 : f32 to vector<1x8xf32>
    %9 = arith.addf %6, %8 : vector<1x8xf32>
    %c0_7 = arith.constant 0 : index
    %c0_8 = arith.constant 0 : index
    %10 = vector.load %arg5[%c0_7, %c0_8] : memref<1x8xf32, #tpu.memory_space<vmem>>, vector<1x8xf32>
    tpu.vector_store %arg5[%c0_7, %c0_8], %9 {strides = array<i32>} : memref<1x8xf32, #tpu.memory_space<vmem>>, vector<1x8xf32>,
    return
  }
  func.func @transform_0(%arg0: i32) -> i32 {
    %c0_i32 = arith.constant 0 : i32
    %c0_i32_0 = arith.constant 0 : i32
    return %c0_i32 : i32
  }
  func.func @transform_1(%arg0: i32) -> (i32, i32) {
    %c0_i32 = arith.constant 0 : i32
    %c0_i32_0 = arith.constant 0 : i32
    %c0_i32_1 = arith.constant 0 : i32
    return %c0_i32, %c0_i32_0 : i32, i32
  }
  func.func @transform_2(%arg0: i32) -> (i32, i32) {
    %c0_i32 = arith.constant 0 : i32
    %c0_i32_0 = arith.constant 0 : i32
    %c0_i32_1 = arith.constant 0 : i32
    return %c0_i32, %c0_i32_0 : i32, i32
  }
  func.func @transform_3(%arg0: i32) -> (i32, i32) {
    %c0_i32 = arith.constant 0 : i32
    %c0_i32_0 = arith.constant 0 : i32
    return %arg0, %c0_i32 : i32, i32
  }
  func.func @transform_4(%arg0: i32) -> (i32, i32) {
    %c0_i32 = arith.constant 0 : i32
    %c0_i32_0 = arith.constant 0 : i32
    return %c0_i32, %arg0 : i32, i32
  }
}

</mosaic_0001>

<llo_original>
// kernel: tpu_custom_call.1
$region0: #{tpu_custom_call.1}
  #allocation0 [shape = 'u32[]', space=smem, size = 0x4, offset = 0x4, fixed_abs, tag = 'smem constant byte address 0x4 - core index']
  #allocation1 [shape = 'u32[144,128]{1,0:T(1,128)}', space=vmem, size = 0x12000, scoped, tag = 'internal scratch']
  #allocation2 [shape = 'f32[1]{0:T(128)S(6)}', space=smem, size = 0x200, scoped, tag = 'scoped memory for tpu_custom_call.1']
  %s0 = inlined_call_operand.<no memory space> [shape: f32[1], index: 0, kind: input, shape index: {}]
  %s1 = inlined_call_operand.vmem [shape: f32[1,32], index: 1, kind: input, shape index: {}]
  %s2 = inlined_call_operand.vmem [shape: f32[1,32], index: 2, kind: input, shape index: {}]
  %s3 = inlined_call_operand.vmem [shape: f32[8,32], index: 3, kind: input, shape index: {}]
  %s4 = inlined_call_operand.hbm [shape: f32[1,8], index: 4, kind: output, shape index: {}]
  %s5 = sld [smem:[#allocation0]]
  $region26: #{tpu_custom_call.1} parent=0
    _
  %s7 = ssub.s32 1, %s5
  %s8 = scalar_select 0, %s7, %s5
  %9 = sst [smem:[#allocation2]] %s0
  $region1: #{tpu_custom_call.1} parent=0
    #allocation3 [shape = 'u8[512]{0}', space=vmem, size = 0x400, scoped, tag = 'output window, operand 0, single buffered']
    #allocation4 [shape = 's32[1]{0}', space=sflag, size = 0x4, scoped, tag = 'scoped memory for tpu_custom_call.1']
    %10 = vsyncpa [#allocation4], 0
    // Predicated region
    $region2: #{tpu_custom_call.1} parent=1 // pred_check
      _
    $region3: #{tpu_custom_call.1} parent=1 // pred_check_branch
      %12 = sbr.rel (0) target = $region5
    $region4: #{tpu_custom_call.1} parent=1 // pred_region
      _
    $region5: #{tpu_custom_call.1} parent=1 // pred_fallthru
      _
    // Predicated region
    $region6: #{tpu_custom_call.1} parent=1 // pred_check
      _
    $region7: #{tpu_custom_call.1} parent=1 // pred_check_branch
      %14 = sbr.rel (0) target = $region9
    $region8: #{tpu_custom_call.1} parent=1 // pred_region
      _
    $region9: #{tpu_custom_call.1} parent=1 // pred_fallthru
      _
    // Predicated region
    $region10: #{tpu_custom_call.1} parent=1 // pred_check
      _
    $region11: #{tpu_custom_call.1} parent=1 // pred_check_branch
      %16 = sbr.rel (0) target = $region13
    $region12: #{tpu_custom_call.1} parent=1 // pred_region
      _
    $region13: #{tpu_custom_call.1} parent=1 // pred_fallthru
      _
    // Predicated region
    $region14: #{tpu_custom_call.1} parent=1 // pred_check
      _
    $region15: #{tpu_custom_call.1} parent=1 // pred_check_branch
      %18 = sbr.rel (0) target = $region17
    $region16: #{tpu_custom_call.1} parent=1 // pred_region
      _
    $region17: #{tpu_custom_call.1} parent=1 // pred_fallthru
      _
    %v19 = vld [vmem:[%s3] sm:$0xff]
    %v20 = vld [vmem:[%s1] sm:$0x1]
    %v21 = vmul.f32 %v19, %v19
    %v22 = vld [vmem:[%s2] sm:$0x1]
    %vm23 = vcmask 261120
    %v25 = vsel %vm23, %v22, 0
    %v28 = vsel %vm23, %v19, 0
    %30 = vmatprep.subr.mxu0 0.0
    %v31 = vand.u32 %v28, 4294901760
    %32 = vmatpush1.xpose.msra.mxu0 %v31
    %33 = vmatprep.subr.mxu0 0.0
    %34 = vmatpush1.xpose.msra.mxu0 0.0
    %35 = vmatprep.subr.mxu0 0.0
    %36 = vmatpush1.xpose.msra.mxu0 0.0
    %37 = vmatprep.subr.mxu0 0.0
    %38 = vmatpush1.xpose.msra.mxu0 0.0
    %39 = vmatprep.subr.mxu0 0.0
    %40 = vmatpush1.xpose.msra.mxu0 0.0
    %41 = vmatprep.subr.mxu0 0.0
    %42 = vmatpush1.xpose.msra.mxu0 0.0
    %43 = vmatprep.subr.mxu0 0.0
    %44 = vmatpush1.xpose.msra.mxu0 0.0
    %45 = vmatprep.subr.mxu0 0.0
    %46 = vmatpush1.xpose.msra.mxu0 0.0
    %47 = vmatprep.subr.mxu0 0.0
    %48 = vmatpush1.xpose.msra.mxu0 0.0
    %49 = vmatprep.subr.mxu0 0.0
    %50 = vmatpush1.xpose.msra.mxu0 0.0
    %51 = vmatprep.subr.mxu0 0.0
    %52 = vmatpush1.xpose.msra.mxu0 0.0
    %53 = vmatprep.subr.mxu0 0.0
    %54 = vmatpush1.xpose.msra.mxu0 0.0
    %55 = vmatprep.subr.mxu0 0.0
    %56 = vmatpush1.xpose.msra.mxu0 0.0
    %57 = vmatprep.subr.mxu0 0.0
    %58 = vmatpush1.xpose.msra.mxu0 0.0
    %59 = vmatprep.subr.mxu0 0.0
    %60 = vmatpush1.xpose.msra.mxu0 0.0
    %61 = vmatprep.subr.mxu0 0.0
    %62 = vmatpush1.xpose.msra.mxu0 0.0
    %63 = vmatprep.subr.mxu0 0.0
    %64 = vmatpush1.xpose.msra.mxu0 0.0
    %65 = vmatprep.subr.mxu0 0.0
    %66 = vmatpush1.xpose.msra.mxu0 0.0
    %67 = vmatprep.subr.mxu0 0.0
    %68 = vmatpush1.xpose.msra.mxu0 0.0
    %69 = vmatprep.subr.mxu0 0.0
    %70 = vmatpush1.xpose.msra.mxu0 0.0
    %71 = vmatprep.subr.mxu0 0.0
    %72 = vmatpush1.xpose.msra.mxu0 0.0
    %73 = vmatprep.subr.mxu0 0.0
    %74 = vmatpush1.xpose.msra.mxu0 0.0
    %75 = vmatprep.subr.mxu0 0.0
    %76 = vmatpush1.xpose.msra.mxu0 0.0
    %77 = vmatprep.subr.mxu0 0.0
    %78 = vmatpush1.xpose.msra.mxu0 0.0
    %79 = vmatprep.subr.mxu0 0.0
    %80 = vmatpush1.xpose.msra.mxu0 0.0
    %81 = vmatprep.subr.mxu0 0.0
    %82 = vmatpush1.xpose.msra.mxu0 0.0
    %83 = vmatprep.subr.mxu0 0.0
    %84 = vmatpush1.xpose.msra.mxu0 0.0
    %85 = vmatprep.subr.mxu0 0.0
    %86 = vmatpush1.xpose.msra.mxu0 0.0
    %87 = vmatprep.subr.mxu0 0.0
    %88 = vmatpush1.xpose.msra.mxu0 0.0
    %89 = vmatprep.subr.mxu0 0.0
    %90 = vmatpush1.xpose.msra.mxu0 0.0
    %91 = vmatprep.subr.mxu0 0.0
    %92 = vmatpush1.xpose.msra.mxu0 0.0
    %93 = vmatprep.subr.mxu0 0.0
    %94 = vmatpush1.xpose.msra.mxu0 0.0
    %95 = vmatprep.mubr.f32.mxu0 0.0
    %v96 = vand.u32 %v25, 4294901760
    %v97 = vsub.f32 %v25, %v96
    %v98 = vand.u32 %v97, 4294901760
    %v99 = vsub.f32 %v97, %v98
    %v100 = vand.u32 %v99, 4294901760
    %101 = vmatmul.mubr.f32.gmra.mrb[0].mxu0 %v100
    %v102 = vpop.f32.mrb[0].mxu0
    %v103 = vadd.f32 0.0, %v102
    %v104 = vpop.f32.mrb[0].mxu0
    %105 = vdwg.mxu0
    %106 = vmatprep.subr.mxu0 0.0
    %v107 = vand.u32 %v28, 4294901760
    %v108 = vsub.f32 %v28, %v107
    %v109 = vand.u32 %v108, 4294901760
    %v110 = vsub.f32 %v108, %v109
    %v111 = vand.u32 %v110, 4294901760
    %112 = vmatpush1.xpose.msra.mxu0 %v111
    %113 = vmatprep.subr.mxu0 0.0
    %114 = vmatpush1.xpose.msra.mxu0 0.0
    %115 = vmatprep.subr.mxu0 0.0
    %116 = vmatpush1.xpose.msra.mxu0 0.0
    %117 = vmatprep.subr.mxu0 0.0
    %118 = vmatpush1.xpose.msra.mxu0 0.0
    %119 = vmatprep.subr.mxu0 0.0
    %120 = vmatpush1.xpose.msra.mxu0 0.0
    %121 = vmatprep.subr.mxu0 0.0
    %122 = vmatpush1.xpose.msra.mxu0 0.0
    %123 = vmatprep.subr.mxu0 0.0
    %124 = vmatpush1.xpose.msra.mxu0 0.0
    %125 = vmatprep.subr.mxu0 0.0
    %126 = vmatpush1.xpose.msra.mxu0 0.0
    %127 = vmatprep.subr.mxu0 0.0
    %128 = vmatpush1.xpose.msra.mxu0 0.0
    %129 = vmatprep.subr.mxu0 0.0
    %130 = vmatpush1.xpose.msra.mxu0 0.0
    %131 = vmatprep.subr.mxu0 0.0
    %132 = vmatpush1.xpose.msra.mxu0 0.0
    %133 = vmatprep.subr.mxu0 0.0
    %134 = vmatpush1.xpose.msra.mxu0 0.0
    %135 = vmatprep.subr.mxu0 0.0
    %136 = vmatpush1.xpose.msra.mxu0 0.0
    %137 = vmatprep.subr.mxu0 0.0
    %138 = vmatpush1.xpose.msra.mxu0 0.0
    %139 = vmatprep.subr.mxu0 0.0
    %140 = vmatpush1.xpose.msra.mxu0 0.0
    %141 = vmatprep.subr.mxu0 0.0
    %142 = vmatpush1.xpose.msra.mxu0 0.0
    %143 = vmatprep.subr.mxu0 0.0
    %144 = vmatpush1.xpose.msra.mxu0 0.0
    %145 = vmatprep.subr.mxu0 0.0
    %146 = vmatpush1.xpose.msra.mxu0 0.0
    %147 = vmatprep.subr.mxu0 0.0
    %148 = vmatpush1.xpose.msra.mxu0 0.0
    %149 = vmatprep.subr.mxu0 0.0
    %150 = vmatpush1.xpose.msra.mxu0 0.0
    %151 = vmatprep.subr.mxu0 0.0
    %152 = vmatpush1.xpose.msra.mxu0 0.0
    %153 = vmatprep.subr.mxu0 0.0
    %154 = vmatpush1.xpose.msra.mxu0 0.0
    %155 = vmatprep.subr.mxu0 0.0
    %156 = vmatpush1.xpose.msra.mxu0 0.0
    %157 = vmatprep.subr.mxu0 0.0
    %158 = vmatpush1.xpose.msra.mxu0 0.0
    %159 = vmatprep.subr.mxu0 0.0
    %160 = vmatpush1.xpose.msra.mxu0 0.0
    %161 = vmatprep.subr.mxu0 0.0
    %162 = vmatpush1.xpose.msra.mxu0 0.0
    %163 = vmatprep.subr.mxu0 0.0
    %164 = vmatpush1.xpose.msra.mxu0 0.0
    %165 = vmatprep.subr.mxu0 0.0
    %166 = vmatpush1.xpose.msra.mxu0 0.0
    %167 = vmatprep.subr.mxu0 0.0
    %168 = vmatpush1.xpose.msra.mxu0 0.0
    %169 = vmatprep.subr.mxu0 0.0
    %170 = vmatpush1.xpose.msra.mxu0 0.0
    %171 = vmatprep.subr.mxu0 0.0
    %172 = vmatpush1.xpose.msra.mxu0 0.0
    %173 = vmatprep.subr.mxu0 0.0
    %174 = vmatpush1.xpose.msra.mxu0 0.0
    %175 = vmatprep.mubr.f32.mxu0 0.0
    %v176 = vand.u32 %v25, 4294901760
    %177 = vmatmul.mubr.f32.gmra.mrb[0].mxu0 %v176
    %v178 = vpop.f32.mrb[0].mxu0
    %v179 = vadd.f32 %v103, %v178
    %v180 = vpop.f32.mrb[0].mxu0
    %181 = vdwg.mxu0
    %182 = vmatprep.subr.mxu0 0.0
    %v183 = vand.u32 %v28, 4294901760
    %v184 = vsub.f32 %v28, %v183
    %185 = vmatpush1.xpose.msra.mxu0 %v184
    %186 = vmatprep.subr.mxu0 0.0
    %187 = vmatpush1.xpose.msra.mxu0 0.0
    %188 = vmatprep.subr.mxu0 0.0
    %189 = vmatpush1.xpose.msra.mxu0 0.0
    %190 = vmatprep.subr.mxu0 0.0
    %191 = vmatpush1.xpose.msra.mxu0 0.0
    %192 = vmatprep.subr.mxu0 0.0
    %193 = vmatpush1.xpose.msra.mxu0 0.0
    %194 = vmatprep.subr.mxu0 0.0
    %195 = vmatpush1.xpose.msra.mxu0 0.0
    %196 = vmatprep.subr.mxu0 0.0
    %197 = vmatpush1.xpose.msra.mxu0 0.0
    %198 = vmatprep.subr.mxu0 0.0
    %199 = vmatpush1.xpose.msra.mxu0 0.0
    %200 = vmatprep.subr.mxu0 0.0
    %201 = vmatpush1.xpose.msra.mxu0 0.0
    %202 = vmatprep.subr.mxu0 0.0
    %203 = vmatpush1.xpose.msra.mxu0 0.0
    %204 = vmatprep.subr.mxu0 0.0
    %205 = vmatpush1.xpose.msra.mxu0 0.0
    %206 = vmatprep.subr.mxu0 0.0
    %207 = vmatpush1.xpose.msra.mxu0 0.0
    %208 = vmatprep.subr.mxu0 0.0
    %209 = vmatpush1.xpose.msra.mxu0 0.0
    %210 = vmatprep.subr.mxu0 0.0
    %211 = vmatpush1.xpose.msra.mxu0 0.0
    %212 = vmatprep.subr.mxu0 0.0
    %213 = vmatpush1.xpose.msra.mxu0 0.0
    %214 = vmatprep.subr.mxu0 0.0
    %215 = vmatpush1.xpose.msra.mxu0 0.0
    %216 = vmatprep.subr.mxu0 0.0
    %217 = vmatpush1.xpose.msra.mxu0 0.0
    %218 = vmatprep.subr.mxu0 0.0
    %219 = vmatpush1.xpose.msra.mxu0 0.0
    %220 = vmatprep.subr.mxu0 0.0
    %221 = vmatpush1.xpose.msra.mxu0 0.0
    %222 = vmatprep.subr.mxu0 0.0
    %223 = vmatpush1.xpose.msra.mxu0 0.0
    %224 = vmatprep.subr.mxu0 0.0
    %225 = vmatpush1.xpose.msra.mxu0 0.0
    %226 = vmatprep.subr.mxu0 0.0
    %227 = vmatpush1.xpose.msra.mxu0 0.0
    %228 = vmatprep.subr.mxu0 0.0
    %229 = vmatpush1.xpose.msra.mxu0 0.0
    %230 = vmatprep.subr.mxu0 0.0
    %231 = vmatpush1.xpose.msra.mxu0 0.0
    %232 = vmatprep.subr.mxu0 0.0
    %233 = vmatpush1.xpose.msra.mxu0 0.0
    %234 = vmatprep.subr.mxu0 0.0
    %235 = vmatpush1.xpose.msra.mxu0 0.0
    %236 = vmatprep.subr.mxu0 0.0
    %237 = vmatpush1.xpose.msra.mxu0 0.0
    %238 = vmatprep.subr.mxu0 0.0
    %239 = vmatpush1.xpose.msra.mxu0 0.0
    %240 = vmatprep.subr.mxu0 0.0
    %241 = vmatpush1.xpose.msra.mxu0 0.0
    %242 = vmatprep.subr.mxu0 0.0
    %243 = vmatpush1.xpose.msra.mxu0 0.0
    %244 = vmatprep.subr.mxu0 0.0
    %245 = vmatpush1.xpose.msra.mxu0 0.0
    %246 = vmatprep.subr.mxu0 0.0
    %247 = vmatpush1.xpose.msra.mxu0 0.0
    %248 = vmatprep.mubr.f32.mxu0 0.0
    %v249 = vand.u32 %v25, 4294901760
    %v250 = vsub.f32 %v25, %v249
    %251 = vmatmul.mubr.f32.gmra.mrb[0].mxu0 %v250
    %v252 = vpop.f32.mrb[0].mxu0
    %v253 = vadd.f32 %v179, %v252
    %v254 = vpop.f32.mrb[0].mxu0
    %255 = vdwg.mxu0
    %256 = vmatprep.subr.mxu0 0.0
    %v257 = vand.u32 %v28, 4294901760
    %258 = vmatpush1.xpose.msra.mxu0 %v257
    %259 = vmatprep.subr.mxu0 0.0
    %260 = vmatpush1.xpose.msra.mxu0 0.0
    %261 = vmatprep.subr.mxu0 0.0
    %262 = vmatpush1.xpose.msra.mxu0 0.0
    %263 = vmatprep.subr.mxu0 0.0
    %264 = vmatpush1.xpose.msra.mxu0 0.0
    %265 = vmatprep.subr.mxu0 0.0
    %266 = vmatpush1.xpose.msra.mxu0 0.0
    %267 = vmatprep.subr.mxu0 0.0
    %268 = vmatpush1.xpose.msra.mxu0 0.0
    %269 = vmatprep.subr.mxu0 0.0
    %270 = vmatpush1.xpose.msra.mxu0 0.0
    %271 = vmatprep.subr.mxu0 0.0
    %272 = vmatpush1.xpose.msra.mxu0 0.0
    %273 = vmatprep.subr.mxu0 0.0
    %274 = vmatpush1.xpose.msra.mxu0 0.0
    %275 = vmatprep.subr.mxu0 0.0
    %276 = vmatpush1.xpose.msra.mxu0 0.0
    %277 = vmatprep.subr.mxu0 0.0
    %278 = vmatpush1.xpose.msra.mxu0 0.0
    %279 = vmatprep.subr.mxu0 0.0
    %280 = vmatpush1.xpose.msra.mxu0 0.0
    %281 = vmatprep.subr.mxu0 0.0
    %282 = vmatpush1.xpose.msra.mxu0 0.0
    %283 = vmatprep.subr.mxu0 0.0
    %284 = vmatpush1.xpose.msra.mxu0 0.0
    %285 = vmatprep.subr.mxu0 0.0
    %286 = vmatpush1.xpose.msra.mxu0 0.0
    %287 = vmatprep.subr.mxu0 0.0
    %288 = vmatpush1.xpose.msra.mxu0 0.0
    %289 = vmatprep.subr.mxu0 0.0
    %290 = vmatpush1.xpose.msra.mxu0 0.0
    %291 = vmatprep.subr.mxu0 0.0
    %292 = vmatpush1.xpose.msra.mxu0 0.0
    %293 = vmatprep.subr.mxu0 0.0
    %294 = vmatpush1.xpose.msra.mxu0 0.0
    %295 = vmatprep.subr.mxu0 0.0
    %296 = vmatpush1.xpose.msra.mxu0 0.0
    %297 = vmatprep.subr.mxu0 0.0
    %298 = vmatpush1.xpose.msra.mxu0 0.0
    %299 = vmatprep.subr.mxu0 0.0
    %300 = vmatpush1.xpose.msra.mxu0 0.0
    %301 = vmatprep.subr.mxu0 0.0
    %302 = vmatpush1.xpose.msra.mxu0 0.0
    %303 = vmatprep.subr.mxu0 0.0
    %304 = vmatpush1.xpose.msra.mxu0 0.0
    %305 = vmatprep.subr.mxu0 0.0
    %306 = vmatpush1.xpose.msra.mxu0 0.0
    %307 = vmatprep.subr.mxu0 0.0
    %308 = vmatpush1.xpose.msra.mxu0 0.0
    %309 = vmatprep.subr.mxu0 0.0
    %310 = vmatpush1.xpose.msra.mxu0 0.0
    %311 = vmatprep.subr.mxu0 0.0
    %312 = vmatpush1.xpose.msra.mxu0 0.0
    %313 = vmatprep.subr.mxu0 0.0
    %314 = vmatpush1.xpose.msra.mxu0 0.0
    %315 = vmatprep.subr.mxu0 0.0
    %316 = vmatpush1.xpose.msra.mxu0 0.0
    %317 = vmatprep.subr.mxu0 0.0
    %318 = vmatpush1.xpose.msra.mxu0 0.0
    %319 = vmatprep.subr.mxu0 0.0
    %320 = vmatpush1.xpose.msra.mxu0 0.0
    %321 = vmatprep.mubr.f32.mxu0 0.0
    %v322 = vand.u32 %v25, 4294901760
    %v323 = vsub.f32 %v25, %v322
    %v324 = vand.u32 %v323, 4294901760
    %325 = vmatmul.mubr.f32.gmra.mrb[0].mxu0 %v324
    %v326 = vpop.f32.mrb[0].mxu0
    %v327 = vadd.f32 %v253, %v326
    %v328 = vpop.f32.mrb[0].mxu0
    %329 = vdwg.mxu0
    %330 = vmatprep.subr.mxu0 0.0
    %v331 = vand.u32 %v28, 4294901760
    %v332 = vsub.f32 %v28, %v331
    %v333 = vand.u32 %v332, 4294901760
    %334 = vmatpush1.xpose.msra.mxu0 %v333
    %335 = vmatprep.subr.mxu0 0.0
    %336 = vmatpush1.xpose.msra.mxu0 0.0
    %337 = vmatprep.subr.mxu0 0.0
    %338 = vmatpush1.xpose.msra.mxu0 0.0
    %339 = vmatprep.subr.mxu0 0.0
    %340 = vmatpush1.xpose.msra.mxu0 0.0
    %341 = vmatprep.subr.mxu0 0.0
    %342 = vmatpush1.xpose.msra.mxu0 0.0
    %343 = vmatprep.subr.mxu0 0.0
    %344 = vmatpush1.xpose.msra.mxu0 0.0
    %345 = vmatprep.subr.mxu0 0.0
    %346 = vmatpush1.xpose.msra.mxu0 0.0
    %347 = vmatprep.subr.mxu0 0.0
    %348 = vmatpush1.xpose.msra.mxu0 0.0
    %349 = vmatprep.subr.mxu0 0.0
    %350 = vmatpush1.xpose.msra.mxu0 0.0
    %351 = vmatprep.subr.mxu0 0.0
    %352 = vmatpush1.xpose.msra.mxu0 0.0
    %353 = vmatprep.subr.mxu0 0.0
    %354 = vmatpush1.xpose.msra.mxu0 0.0
    %355 = vmatprep.subr.mxu0 0.0
    %356 = vmatpush1.xpose.msra.mxu0 0.0
    %357 = vmatprep.subr.mxu0 0.0
    %358 = vmatpush1.xpose.msra.mxu0 0.0
    %359 = vmatprep.subr.mxu0 0.0
    %360 = vmatpush1.xpose.msra.mxu0 0.0
    %361 = vmatprep.subr.mxu0 0.0
    %362 = vmatpush1.xpose.msra.mxu0 0.0
    %363 = vmatprep.subr.mxu0 0.0
    %364 = vmatpush1.xpose.msra.mxu0 0.0
    %365 = vmatprep.subr.mxu0 0.0
    %366 = vmatpush1.xpose.msra.mxu0 0.0
    %367 = vmatprep.subr.mxu0 0.0
    %368 = vmatpush1.xpose.msra.mxu0 0.0
    %369 = vmatprep.subr.mxu0 0.0
    %370 = vmatpush1.xpose.msra.mxu0 0.0
    %371 = vmatprep.subr.mxu0 0.0
    %372 = vmatpush1.xpose.msra.mxu0 0.0
    %373 = vmatprep.subr.mxu0 0.0
    %374 = vmatpush1.xpose.msra.mxu0 0.0
    %375 = vmatprep.subr.mxu0 0.0
    %376 = vmatpush1.xpose.msra.mxu0 0.0
    %377 = vmatprep.subr.mxu0 0.0
    %378 = vmatpush1.xpose.msra.mxu0 0.0
    %379 = vmatprep.subr.mxu0 0.0
    %380 = vmatpush1.xpose.msra.mxu0 0.0
    %381 = vmatprep.subr.mxu0 0.0
    %382 = vmatpush1.xpose.msra.mxu0 0.0
    %383 = vmatprep.subr.mxu0 0.0
    %384 = vmatpush1.xpose.msra.mxu0 0.0
    %385 = vmatprep.subr.mxu0 0.0
    %386 = vmatpush1.xpose.msra.mxu0 0.0
    %387 = vmatprep.subr.mxu0 0.0
    %388 = vmatpush1.xpose.msra.mxu0 0.0
    %389 = vmatprep.subr.mxu0 0.0
    %390 = vmatpush1.xpose.msra.mxu0 0.0
    %391 = vmatprep.subr.mxu0 0.0
    %392 = vmatpush1.xpose.msra.mxu0 0.0
    %393 = vmatprep.subr.mxu0 0.0
    %394 = vmatpush1.xpose.msra.mxu0 0.0
    %395 = vmatprep.subr.mxu0 0.0
    %396 = vmatpush1.xpose.msra.mxu0 0.0
    %397 = vmatprep.mubr.f32.mxu0 0.0
    %v398 = vand.u32 %v25, 4294901760
    %399 = vmatmul.mubr.f32.gmra.mrb[0].mxu0 %v398
    %v400 = vpop.f32.mrb[0].mxu0
    %v401 = vadd.f32 %v327, %v400
    %v402 = vpop.f32.mrb[0].mxu0
    %403 = vdwg.mxu0
    %404 = vmatprep.subr.mxu0 0.0
    %v405 = vand.u32 %v28, 4294901760
    %406 = vmatpush1.xpose.msra.mxu0 %v405
    %407 = vmatprep.subr.mxu0 0.0
    %408 = vmatpush1.xpose.msra.mxu0 0.0
    %409 = vmatprep.subr.mxu0 0.0
    %410 = vmatpush1.xpose.msra.mxu0 0.0
    %411 = vmatprep.subr.mxu0 0.0
    %412 = vmatpush1.xpose.msra.mxu0 0.0
    %413 = vmatprep.subr.mxu0 0.0
    %414 = vmatpush1.xpose.msra.mxu0 0.0
    %415 = vmatprep.subr.mxu0 0.0
    %416 = vmatpush1.xpose.msra.mxu0 0.0
    %417 = vmatprep.subr.mxu0 0.0
    %418 = vmatpush1.xpose.msra.mxu0 0.0
    %419 = vmatprep.subr.mxu0 0.0
    %420 = vmatpush1.xpose.msra.mxu0 0.0
    %421 = vmatprep.subr.mxu0 0.0
    %422 = vmatpush1.xpose.msra.mxu0 0.0
    %423 = vmatprep.subr.mxu0 0.0
    %424 = vmatpush1.xpose.msra.mxu0 0.0
    %425 = vmatprep.subr.mxu0 0.0
    %426 = vmatpush1.xpose.msra.mxu0 0.0
    %427 = vmatprep.subr.mxu0 0.0
    %428 = vmatpush1.xpose.msra.mxu0 0.0
    %429 = vmatprep.subr.mxu0 0.0
    %430 = vmatpush1.xpose.msra.mxu0 0.0
    %431 = vmatprep.subr.mxu0 0.0
    %432 = vmatpush1.xpose.msra.mxu0 0.0
    %433 = vmatprep.subr.mxu0 0.0
    %434 = vmatpush1.xpose.msra.mxu0 0.0
    %435 = vmatprep.subr.mxu0 0.0
    %436 = vmatpush1.xpose.msra.mxu0 0.0
    %437 = vmatprep.subr.mxu0 0.0
    %438 = vmatpush1.xpose.msra.mxu0 0.0
    %439 = vmatprep.subr.mxu0 0.0
    %440 = vmatpush1.xpose.msra.mxu0 0.0
    %441 = vmatprep.subr.mxu0 0.0
    %442 = vmatpush1.xpose.msra.mxu0 0.0
    %443 = vmatprep.subr.mxu0 0.0
    %444 = vmatpush1.xpose.msra.mxu0 0.0
    %445 = vmatprep.subr.mxu0 0.0
    %446 = vmatpush1.xpose.msra.mxu0 0.0
    %447 = vmatprep.subr.mxu0 0.0
    %448 = vmatpush1.xpose.msra.mxu0 0.0
    %449 = vmatprep.subr.mxu0 0.0
    %450 = vmatpush1.xpose.msra.mxu0 0.0
    %451 = vmatprep.subr.mxu0 0.0
    %452 = vmatpush1.xpose.msra.mxu0 0.0
    %453 = vmatprep.subr.mxu0 0.0
    %454 = vmatpush1.xpose.msra.mxu0 0.0
    %455 = vmatprep.subr.mxu0 0.0
    %456 = vmatpush1.xpose.msra.mxu0 0.0
    %457 = vmatprep.subr.mxu0 0.0
    %458 = vmatpush1.xpose.msra.mxu0 0.0
    %459 = vmatprep.subr.mxu0 0.0
    %460 = vmatpush1.xpose.msra.mxu0 0.0
    %461 = vmatprep.subr.mxu0 0.0
    %462 = vmatpush1.xpose.msra.mxu0 0.0
    %463 = vmatprep.subr.mxu0 0.0
    %464 = vmatpush1.xpose.msra.mxu0 0.0
    %465 = vmatprep.subr.mxu0 0.0
    %466 = vmatpush1.xpose.msra.mxu0 0.0
    %467 = vmatprep.subr.mxu0 0.0
    %468 = vmatpush1.xpose.msra.mxu0 0.0
    %469 = vmatprep.mubr.f32.mxu0 0.0
    %v470 = vand.u32 %v25, 4294901760
    %471 = vmatmul.mubr.f32.gmra.mrb[0].mxu0 %v470
    %v472 = vpop.f32.mrb[0].mxu0
    %v473 = vadd.f32 %v401, %v472
    %v474 = vpop.f32.mrb[0].mxu0
    %475 = vdwg.mxu0
    %v477 = vsel %vm23, %v20, 0
    %v480 = vsel %vm23, %v21, 0
    %482 = vmatprep.subr.mxu0 0.0
    %v483 = vand.u32 %v480, 4294901760
    %484 = vmatpush1.xpose.msra.mxu0 %v483
    %485 = vmatprep.subr.mxu0 0.0
    %486 = vmatpush1.xpose.msra.mxu0 0.0
    %487 = vmatprep.subr.mxu0 0.0
    %488 = vmatpush1.xpose.msra.mxu0 0.0
    %489 = vmatprep.subr.mxu0 0.0
    %490 = vmatpush1.xpose.msra.mxu0 0.0
    %491 = vmatprep.subr.mxu0 0.0
    %492 = vmatpush1.xpose.msra.mxu0 0.0
    %493 = vmatprep.subr.mxu0 0.0
    %494 = vmatpush1.xpose.msra.mxu0 0.0
    %495 = vmatprep.subr.mxu0 0.0
    %496 = vmatpush1.xpose.msra.mxu0 0.0
    %497 = vmatprep.subr.mxu0 0.0
    %498 = vmatpush1.xpose.msra.mxu0 0.0
    %499 = vmatprep.subr.mxu0 0.0
    %500 = vmatpush1.xpose.msra.mxu0 0.0
    %501 = vmatprep.subr.mxu0 0.0
    %502 = vmatpush1.xpose.msra.mxu0 0.0
    %503 = vmatprep.subr.mxu0 0.0
    %504 = vmatpush1.xpose.msra.mxu0 0.0
    %505 = vmatprep.subr.mxu0 0.0
    %506 = vmatpush1.xpose.msra.mxu0 0.0
    %507 = vmatprep.subr.mxu0 0.0
    %508 = vmatpush1.xpose.msra.mxu0 0.0
    %509 = vmatprep.subr.mxu0 0.0
    %510 = vmatpush1.xpose.msra.mxu0 0.0
    %511 = vmatprep.subr.mxu0 0.0
    %512 = vmatpush1.xpose.msra.mxu0 0.0
    %513 = vmatprep.subr.mxu0 0.0
    %514 = vmatpush1.xpose.msra.mxu0 0.0
    %515 = vmatprep.subr.mxu0 0.0
    %516 = vmatpush1.xpose.msra.mxu0 0.0
    %517 = vmatprep.subr.mxu0 0.0
    %518 = vmatpush1.xpose.msra.mxu0 0.0
    %519 = vmatprep.subr.mxu0 0.0
    %520 = vmatpush1.xpose.msra.mxu0 0.0
    %521 = vmatprep.subr.mxu0 0.0
    %522 = vmatpush1.xpose.msra.mxu0 0.0
    %523 = vmatprep.subr.mxu0 0.0
    %524 = vmatpush1.xpose.msra.mxu0 0.0
    %525 = vmatprep.subr.mxu0 0.0
    %526 = vmatpush1.xpose.msra.mxu0 0.0
    %527 = vmatprep.subr.mxu0 0.0
    %528 = vmatpush1.xpose.msra.mxu0 0.0
    %529 = vmatprep.subr.mxu0 0.0
    %530 = vmatpush1.xpose.msra.mxu0 0.0
    %531 = vmatprep.subr.mxu0 0.0
    %532 = vmatpush1.xpose.msra.mxu0 0.0
    %533 = vmatprep.subr.mxu0 0.0
    %534 = vmatpush1.xpose.msra.mxu0 0.0
    %535 = vmatprep.subr.mxu0 0.0
    %536 = vmatpush1.xpose.msra.mxu0 0.0
    %537 = vmatprep.subr.mxu0 0.0
    %538 = vmatpush1.xpose.msra.mxu0 0.0
    %539 = vmatprep.subr.mxu0 0.0
    %540 = vmatpush1.xpose.msra.mxu0 0.0
    %541 = vmatprep.subr.mxu0 0.0
    %542 = vmatpush1.xpose.msra.mxu0 0.0
    %543 = vmatprep.subr.mxu0 0.0
    %544 = vmatpush1.xpose.msra.mxu0 0.0
    %545 = vmatprep.subr.mxu0 0.0
    %546 = vmatpush1.xpose.msra.mxu0 0.0
    %547 = vmatprep.mubr.f32.mxu0 0.0
    %v548 = vand.u32 %v477, 4294901760
    %v549 = vsub.f32 %v477, %v548
    %v550 = vand.u32 %v549, 4294901760
    %v551 = vsub.f32 %v549, %v550
    %v552 = vand.u32 %v551, 4294901760
    %553 = vmatmul.mubr.f32.gmra.mrb[0].mxu0 %v552
    %v554 = vpop.f32.mrb[0].mxu0
    %v555 = vadd.f32 %v473, %v554
    %v556 = vpop.f32.mrb[0].mxu0
    %557 = vdwg.mxu0
    %558 = vmatprep.subr.mxu0 0.0
    %v559 = vand.u32 %v480, 4294901760
    %v560 = vsub.f32 %v480, %v559
    %v561 = vand.u32 %v560, 4294901760
    %v562 = vsub.f32 %v560, %v561
    %v563 = vand.u32 %v562, 4294901760
    %564 = vmatpush1.xpose.msra.mxu0 %v563
    %565 = vmatprep.subr.mxu0 0.0
    %566 = vmatpush1.xpose.msra.mxu0 0.0
    %567 = vmatprep.subr.mxu0 0.0
    %568 = vmatpush1.xpose.msra.mxu0 0.0
    %569 = vmatprep.subr.mxu0 0.0
    %570 = vmatpush1.xpose.msra.mxu0 0.0
    %571 = vmatprep.subr.mxu0 0.0
    %572 = vmatpush1.xpose.msra.mxu0 0.0
    %573 = vmatprep.subr.mxu0 0.0
    %574 = vmatpush1.xpose.msra.mxu0 0.0
    %575 = vmatprep.subr.mxu0 0.0
    %576 = vmatpush1.xpose.msra.mxu0 0.0
    %577 = vmatprep.subr.mxu0 0.0
    %578 = vmatpush1.xpose.msra.mxu0 0.0
    %579 = vmatprep.subr.mxu0 0.0
    %580 = vmatpush1.xpose.msra.mxu0 0.0
    %581 = vmatprep.subr.mxu0 0.0
    %582 = vmatpush1.xpose.msra.mxu0 0.0
    %583 = vmatprep.subr.mxu0 0.0
    %584 = vmatpush1.xpose.msra.mxu0 0.0
    %585 = vmatprep.subr.mxu0 0.0
    %586 = vmatpush1.xpose.msra.mxu0 0.0
    %587 = vmatprep.subr.mxu0 0.0
    %588 = vmatpush1.xpose.msra.mxu0 0.0
    %589 = vmatprep.subr.mxu0 0.0
    %590 = vmatpush1.xpose.msra.mxu0 0.0
    %591 = vmatprep.subr.mxu0 0.0
    %592 = vmatpush1.xpose.msra.mxu0 0.0
    %593 = vmatprep.subr.mxu0 0.0
    %594 = vmatpush1.xpose.msra.mxu0 0.0
    %595 = vmatprep.subr.mxu0 0.0
    %596 = vmatpush1.xpose.msra.mxu0 0.0
    %597 = vmatprep.subr.mxu0 0.0
    %598 = vmatpush1.xpose.msra.mxu0 0.0
    %599 = vmatprep.subr.mxu0 0.0
    %600 = vmatpush1.xpose.msra.mxu0 0.0
    %601 = vmatprep.subr.mxu0 0.0
    %602 = vmatpush1.xpose.msra.mxu0 0.0
    %603 = vmatprep.subr.mxu0 0.0
    %604 = vmatpush1.xpose.msra.mxu0 0.0
    %605 = vmatprep.subr.mxu0 0.0
    %606 = vmatpush1.xpose.msra.mxu0 0.0
    %607 = vmatprep.subr.mxu0 0.0
    %608 = vmatpush1.xpose.msra.mxu0 0.0
    %609 = vmatprep.subr.mxu0 0.0
    %610 = vmatpush1.xpose.msra.mxu0 0.0
    %611 = vmatprep.subr.mxu0 0.0
    %612 = vmatpush1.xpose.msra.mxu0 0.0
    %613 = vmatprep.subr.mxu0 0.0
    %614 = vmatpush1.xpose.msra.mxu0 0.0
    %615 = vmatprep.subr.mxu0 0.0
    %616 = vmatpush1.xpose.msra.mxu0 0.0
    %617 = vmatprep.subr.mxu0 0.0
    %618 = vmatpush1.xpose.msra.mxu0 0.0
    %619 = vmatprep.subr.mxu0 0.0
    %620 = vmatpush1.xpose.msra.mxu0 0.0
    %621 = vmatprep.subr.mxu0 0.0
    %622 = vmatpush1.xpose.msra.mxu0 0.0
    %623 = vmatprep.subr.mxu0 0.0
    %624 = vmatpush1.xpose.msra.mxu0 0.0
    %625 = vmatprep.subr.mxu0 0.0
    %626 = vmatpush1.xpose.msra.mxu0 0.0
    %627 = vmatprep.mubr.f32.mxu0 0.0
    %v628 = vand.u32 %v477, 4294901760
    %629 = vmatmul.mubr.f32.gmra.mrb[0].mxu0 %v628
    %v630 = vpop.f32.mrb[0].mxu0
    %v631 = vadd.f32 %v555, %v630
    %v632 = vpop.f32.mrb[0].mxu0
    %633 = vdwg.mxu0
    %634 = vmatprep.subr.mxu0 0.0
    %v635 = vand.u32 %v480, 4294901760
    %v636 = vsub.f32 %v480, %v635
    %637 = vmatpush1.xpose.msra.mxu0 %v636
    %638 = vmatprep.subr.mxu0 0.0
    %639 = vmatpush1.xpose.msra.mxu0 0.0
    %640 = vmatprep.subr.mxu0 0.0
    %641 = vmatpush1.xpose.msra.mxu0 0.0
    %642 = vmatprep.subr.mxu0 0.0
    %643 = vmatpush1.xpose.msra.mxu0 0.0
    %644 = vmatprep.subr.mxu0 0.0
    %645 = vmatpush1.xpose.msra.mxu0 0.0
    %646 = vmatprep.subr.mxu0 0.0
    %647 = vmatpush1.xpose.msra.mxu0 0.0
    %648 = vmatprep.subr.mxu0 0.0
    %649 = vmatpush1.xpose.msra.mxu0 0.0
    %650 = vmatprep.subr.mxu0 0.0
    %651 = vmatpush1.xpose.msra.mxu0 0.0
    %652 = vmatprep.subr.mxu0 0.0
    %653 = vmatpush1.xpose.msra.mxu0 0.0
    %654 = vmatprep.subr.mxu0 0.0
    %655 = vmatpush1.xpose.msra.mxu0 0.0
    %656 = vmatprep.subr.mxu0 0.0
    %657 = vmatpush1.xpose.msra.mxu0 0.0
    %658 = vmatprep.subr.mxu0 0.0
    %659 = vmatpush1.xpose.msra.mxu0 0.0
    %660 = vmatprep.subr.mxu0 0.0
    %661 = vmatpush1.xpose.msra.mxu0 0.0
    %662 = vmatprep.subr.mxu0 0.0
    %663 = vmatpush1.xpose.msra.mxu0 0.0
    %664 = vmatprep.subr.mxu0 0.0
    %665 = vmatpush1.xpose.msra.mxu0 0.0
    %666 = vmatprep.subr.mxu0 0.0
    %667 = vmatpush1.xpose.msra.mxu0 0.0
    %668 = vmatprep.subr.mxu0 0.0
    %669 = vmatpush1.xpose.msra.mxu0 0.0
    %670 = vmatprep.subr.mxu0 0.0
    %671 = vmatpush1.xpose.msra.mxu0 0.0
    %672 = vmatprep.subr.mxu0 0.0
    %673 = vmatpush1.xpose.msra.mxu0 0.0
    %674 = vmatprep.subr.mxu0 0.0
    %675 = vmatpush1.xpose.msra.mxu0 0.0
    %676 = vmatprep.subr.mxu0 0.0
    %677 = vmatpush1.xpose.msra.mxu0 0.0
    %678 = vmatprep.subr.mxu0 0.0
    %679 = vmatpush1.xpose.msra.mxu0 0.0
    %680 = vmatprep.subr.mxu0 0.0
    %681 = vmatpush1.xpose.msra.mxu0 0.0
    %682 = vmatprep.subr.mxu0 0.0
    %683 = vmatpush1.xpose.msra.mxu0 0.0
    %684 = vmatprep.subr.mxu0 0.0
    %685 = vmatpush1.xpose.msra.mxu0 0.0
    %686 = vmatprep.subr.mxu0 0.0
    %687 = vmatpush1.xpose.msra.mxu0 0.0
    %688 = vmatprep.subr.mxu0 0.0
    %689 = vmatpush1.xpose.msra.mxu0 0.0
    %690 = vmatprep.subr.mxu0 0.0
    %691 = vmatpush1.xpose.msra.mxu0 0.0
    %692 = vmatprep.subr.mxu0 0.0
    %693 = vmatpush1.xpose.msra.mxu0 0.0
    %694 = vmatprep.subr.mxu0 0.0
    %695 = vmatpush1.xpose.msra.mxu0 0.0
    %696 = vmatprep.subr.mxu0 0.0
    %697 = vmatpush1.xpose.msra.mxu0 0.0
    %698 = vmatprep.subr.mxu0 0.0
    %699 = vmatpush1.xpose.msra.mxu0 0.0
    %700 = vmatprep.mubr.f32.mxu0 0.0
    %v701 = vand.u32 %v477, 4294901760
    %v702 = vsub.f32 %v477, %v701
    %703 = vmatmul.mubr.f32.gmra.mrb[0].mxu0 %v702
    %v704 = vpop.f32.mrb[0].mxu0
    %v705 = vadd.f32 %v631, %v704
    %v706 = vpop.f32.mrb[0].mxu0
    %707 = vdwg.mxu0
    %708 = vmatprep.subr.mxu0 0.0
    %v709 = vand.u32 %v480, 4294901760
    %710 = vmatpush1.xpose.msra.mxu0 %v709
    %711 = vmatprep.subr.mxu0 0.0
    %712 = vmatpush1.xpose.msra.mxu0 0.0
    %713 = vmatprep.subr.mxu0 0.0
    %714 = vmatpush1.xpose.msra.mxu0 0.0
    %715 = vmatprep.subr.mxu0 0.0
    %716 = vmatpush1.xpose.msra.mxu0 0.0
    %717 = vmatprep.subr.mxu0 0.0
    %718 = vmatpush1.xpose.msra.mxu0 0.0
    %719 = vmatprep.subr.mxu0 0.0
    %720 = vmatpush1.xpose.msra.mxu0 0.0
    %721 = vmatprep.subr.mxu0 0.0
    %722 = vmatpush1.xpose.msra.mxu0 0.0
    %723 = vmatprep.subr.mxu0 0.0
    %724 = vmatpush1.xpose.msra.mxu0 0.0
    %725 = vmatprep.subr.mxu0 0.0
    %726 = vmatpush1.xpose.msra.mxu0 0.0
    %727 = vmatprep.subr.mxu0 0.0
    %728 = vmatpush1.xpose.msra.mxu0 0.0
    %729 = vmatprep.subr.mxu0 0.0
    %730 = vmatpush1.xpose.msra.mxu0 0.0
    %731 = vmatprep.subr.mxu0 0.0
    %732 = vmatpush1.xpose.msra.mxu0 0.0
    %733 = vmatprep.subr.mxu0 0.0
    %734 = vmatpush1.xpose.msra.mxu0 0.0
    %735 = vmatprep.subr.mxu0 0.0
    %736 = vmatpush1.xpose.msra.mxu0 0.0
    %737 = vmatprep.subr.mxu0 0.0
    %738 = vmatpush1.xpose.msra.mxu0 0.0
    %739 = vmatprep.subr.mxu0 0.0
    %740 = vmatpush1.xpose.msra.mxu0 0.0
    %741 = vmatprep.subr.mxu0 0.0
    %742 = vmatpush1.xpose.msra.mxu0 0.0
    %743 = vmatprep.subr.mxu0 0.0
    %744 = vmatpush1.xpose.msra.mxu0 0.0
    %745 = vmatprep.subr.mxu0 0.0
    %746 = vmatpush1.xpose.msra.mxu0 0.0
    %747 = vmatprep.subr.mxu0 0.0
    %748 = vmatpush1.xpose.msra.mxu0 0.0
    %749 = vmatprep.subr.mxu0 0.0
    %750 = vmatpush1.xpose.msra.mxu0 0.0
    %751 = vmatprep.subr.mxu0 0.0
    %752 = vmatpush1.xpose.msra.mxu0 0.0
    %753 = vmatprep.subr.mxu0 0.0
    %754 = vmatpush1.xpose.msra.mxu0 0.0
    %755 = vmatprep.subr.mxu0 0.0
    %756 = vmatpush1.xpose.msra.mxu0 0.0
    %757 = vmatprep.subr.mxu0 0.0
    %758 = vmatpush1.xpose.msra.mxu0 0.0
    %759 = vmatprep.subr.mxu0 0.0
    %760 = vmatpush1.xpose.msra.mxu0 0.0
    %761 = vmatprep.subr.mxu0 0.0
    %762 = vmatpush1.xpose.msra.mxu0 0.0
    %763 = vmatprep.subr.mxu0 0.0
    %764 = vmatpush1.xpose.msra.mxu0 0.0
    %765 = vmatprep.subr.mxu0 0.0
    %766 = vmatpush1.xpose.msra.mxu0 0.0
    %767 = vmatprep.subr.mxu0 0.0
    %768 = vmatpush1.xpose.msra.mxu0 0.0
    %769 = vmatprep.subr.mxu0 0.0
    %770 = vmatpush1.xpose.msra.mxu0 0.0
    %771 = vmatprep.subr.mxu0 0.0
    %772 = vmatpush1.xpose.msra.mxu0 0.0
    %773 = vmatprep.mubr.f32.mxu0 0.0
    %v774 = vand.u32 %v477, 4294901760
    %v775 = vsub.f32 %v477, %v774
    %v776 = vand.u32 %v775, 4294901760
    %777 = vmatmul.mubr.f32.gmra.mrb[0].mxu0 %v776
    %v778 = vpop.f32.mrb[0].mxu0
    %v779 = vadd.f32 %v705, %v778
    %v780 = vpop.f32.mrb[0].mxu0
    %781 = vdwg.mxu0
    %782 = vmatprep.subr.mxu0 0.0
    %v783 = vand.u32 %v480, 4294901760
    %v784 = vsub.f32 %v480, %v783
    %v785 = vand.u32 %v784, 4294901760
    %786 = vmatpush1.xpose.msra.mxu0 %v785
    %787 = vmatprep.subr.mxu0 0.0
    %788 = vmatpush1.xpose.msra.mxu0 0.0
    %789 = vmatprep.subr.mxu0 0.0
    %790 = vmatpush1.xpose.msra.mxu0 0.0
    %791 = vmatprep.subr.mxu0 0.0
    %792 = vmatpush1.xpose.msra.mxu0 0.0
    %793 = vmatprep.subr.mxu0 0.0
    %794 = vmatpush1.xpose.msra.mxu0 0.0
    %795 = vmatprep.subr.mxu0 0.0
    %796 = vmatpush1.xpose.msra.mxu0 0.0
    %797 = vmatprep.subr.mxu0 0.0
    %798 = vmatpush1.xpose.msra.mxu0 0.0
    %799 = vmatprep.subr.mxu0 0.0
    %800 = vmatpush1.xpose.msra.mxu0 0.0
    %801 = vmatprep.subr.mxu0 0.0
    %802 = vmatpush1.xpose.msra.mxu0 0.0
    %803 = vmatprep.subr.mxu0 0.0
    %804 = vmatpush1.xpose.msra.mxu0 0.0
    %805 = vmatprep.subr.mxu0 0.0
    %806 = vmatpush1.xpose.msra.mxu0 0.0
    %807 = vmatprep.subr.mxu0 0.0
    %808 = vmatpush1.xpose.msra.mxu0 0.0
    %809 = vmatprep.subr.mxu0 0.0
    %810 = vmatpush1.xpose.msra.mxu0 0.0
    %811 = vmatprep.subr.mxu0 0.0
    %812 = vmatpush1.xpose.msra.mxu0 0.0
    %813 = vmatprep.subr.mxu0 0.0
    %814 = vmatpush1.xpose.msra.mxu0 0.0
    %815 = vmatprep.subr.mxu0 0.0
    %816 = vmatpush1.xpose.msra.mxu0 0.0
    %817 = vmatprep.subr.mxu0 0.0
    %818 = vmatpush1.xpose.msra.mxu0 0.0
    %819 = vmatprep.subr.mxu0 0.0
    %820 = vmatpush1.xpose.msra.mxu0 0.0
    %821 = vmatprep.subr.mxu0 0.0
    %822 = vmatpush1.xpose.msra.mxu0 0.0
    %823 = vmatprep.subr.mxu0 0.0
    %824 = vmatpush1.xpose.msra.mxu0 0.0
    %825 = vmatprep.subr.mxu0 0.0
    %826 = vmatpush1.xpose.msra.mxu0 0.0
    %827 = vmatprep.subr.mxu0 0.0
    %828 = vmatpush1.xpose.msra.mxu0 0.0
    %829 = vmatprep.subr.mxu0 0.0
    %830 = vmatpush1.xpose.msra.mxu0 0.0
    %831 = vmatprep.subr.mxu0 0.0
    %832 = vmatpush1.xpose.msra.mxu0 0.0
    %833 = vmatprep.subr.mxu0 0.0
    %834 = vmatpush1.xpose.msra.mxu0 0.0
    %835 = vmatprep.subr.mxu0 0.0
    %836 = vmatpush1.xpose.msra.mxu0 0.0
    %837 = vmatprep.subr.mxu0 0.0
    %838 = vmatpush1.xpose.msra.mxu0 0.0
    %839 = vmatprep.subr.mxu0 0.0
    %840 = vmatpush1.xpose.msra.mxu0 0.0
    %841 = vmatprep.subr.mxu0 0.0
    %842 = vmatpush1.xpose.msra.mxu0 0.0
    %843 = vmatprep.subr.mxu0 0.0
    %844 = vmatpush1.xpose.msra.mxu0 0.0
    %845 = vmatprep.subr.mxu0 0.0
    %846 = vmatpush1.xpose.msra.mxu0 0.0
    %847 = vmatprep.subr.mxu0 0.0
    %848 = vmatpush1.xpose.msra.mxu0 0.0
    %849 = vmatprep.mubr.f32.mxu0 0.0
    %v850 = vand.u32 %v477, 4294901760
    %851 = vmatmul.mubr.f32.gmra.mrb[0].mxu0 %v850
    %v852 = vpop.f32.mrb[0].mxu0
    %v853 = vadd.f32 %v779, %v852
    %v854 = vpop.f32.mrb[0].mxu0
    %855 = vdwg.mxu0
    %856 = vmatprep.subr.mxu0 0.0
    %v857 = vand.u32 %v480, 4294901760
    %858 = vmatpush1.xpose.msra.mxu0 %v857
    %859 = vmatprep.subr.mxu0 0.0
    %860 = vmatpush1.xpose.msra.mxu0 0.0
    %861 = vmatprep.subr.mxu0 0.0
    %862 = vmatpush1.xpose.msra.mxu0 0.0
    %863 = vmatprep.subr.mxu0 0.0
    %864 = vmatpush1.xpose.msra.mxu0 0.0
    %865 = vmatprep.subr.mxu0 0.0
    %866 = vmatpush1.xpose.msra.mxu0 0.0
    %867 = vmatprep.subr.mxu0 0.0
    %868 = vmatpush1.xpose.msra.mxu0 0.0
    %869 = vmatprep.subr.mxu0 0.0
    %870 = vmatpush1.xpose.msra.mxu0 0.0
    %871 = vmatprep.subr.mxu0 0.0
    %872 = vmatpush1.xpose.msra.mxu0 0.0
    %873 = vmatprep.subr.mxu0 0.0
    %874 = vmatpush1.xpose.msra.mxu0 0.0
    %875 = vmatprep.subr.mxu0 0.0
    %876 = vmatpush1.xpose.msra.mxu0 0.0
    %877 = vmatprep.subr.mxu0 0.0
    %878 = vmatpush1.xpose.msra.mxu0 0.0
    %879 = vmatprep.subr.mxu0 0.0
    %880 = vmatpush1.xpose.msra.mxu0 0.0
    %881 = vmatprep.subr.mxu0 0.0
    %882 = vmatpush1.xpose.msra.mxu0 0.0
    %883 = vmatprep.subr.mxu0 0.0
    %884 = vmatpush1.xpose.msra.mxu0 0.0
    %885 = vmatprep.subr.mxu0 0.0
    %886 = vmatpush1.xpose.msra.mxu0 0.0
    %887 = vmatprep.subr.mxu0 0.0
    %888 = vmatpush1.xpose.msra.mxu0 0.0
    %889 = vmatprep.subr.mxu0 0.0
    %890 = vmatpush1.xpose.msra.mxu0 0.0
    %891 = vmatprep.subr.mxu0 0.0
    %892 = vmatpush1.xpose.msra.mxu0 0.0
    %893 = vmatprep.subr.mxu0 0.0
    %894 = vmatpush1.xpose.msra.mxu0 0.0
    %895 = vmatprep.subr.mxu0 0.0
    %896 = vmatpush1.xpose.msra.mxu0 0.0
    %897 = vmatprep.subr.mxu0 0.0
    %898 = vmatpush1.xpose.msra.mxu0 0.0
    %899 = vmatprep.subr.mxu0 0.0
    %900 = vmatpush1.xpose.msra.mxu0 0.0
    %901 = vmatprep.subr.mxu0 0.0
    %902 = vmatpush1.xpose.msra.mxu0 0.0
    %903 = vmatprep.subr.mxu0 0.0
    %904 = vmatpush1.xpose.msra.mxu0 0.0
    %905 = vmatprep.subr.mxu0 0.0
    %906 = vmatpush1.xpose.msra.mxu0 0.0
    %907 = vmatprep.subr.mxu0 0.0
    %908 = vmatpush1.xpose.msra.mxu0 0.0
    %909 = vmatprep.subr.mxu0 0.0
    %910 = vmatpush1.xpose.msra.mxu0 0.0
    %911 = vmatprep.subr.mxu0 0.0
    %912 = vmatpush1.xpose.msra.mxu0 0.0
    %913 = vmatprep.subr.mxu0 0.0
    %914 = vmatpush1.xpose.msra.mxu0 0.0
    %915 = vmatprep.subr.mxu0 0.0
    %916 = vmatpush1.xpose.msra.mxu0 0.0
    %917 = vmatprep.subr.mxu0 0.0
    %918 = vmatpush1.xpose.msra.mxu0 0.0
    %919 = vmatprep.subr.mxu0 0.0
    %920 = vmatpush1.xpose.msra.mxu0 0.0
    %921 = vmatprep.mubr.f32.mxu0 0.0
    %v922 = vand.u32 %v477, 4294901760
    %923 = vmatmul.mubr.f32.gmra.mrb[0].mxu0 %v922
    %v924 = vpop.f32.mrb[0].mxu0
    %v925 = vadd.f32 %v853, %v924
    %v926 = vpop.f32.mrb[0].mxu0
    %927 = vdwg.mxu0
    %s928 = sld [smem:[#allocation2]]
    %v929 = vstv %s928
    %v930 = vadd.f32 %v925, %v929
    %vm931 = vcmask 57344
    %932 = vst.msk [vmem:[#allocation3] sm:$0x1] %vm931, %v930
    // Predicated region
    $region18: #{tpu_custom_call.1} parent=1 // pred_check
      _
    $region19: #{tpu_custom_call.1} parent=1 // pred_check_branch
      %934 = sbr.rel (0) target = $region21
    $region20: #{tpu_custom_call.1} parent=1 // pred_region
      %s936 = ssub.s32 16, 16
      %937 = vsyncadd [#allocation4], %s936
      %s939 = sshll.u32 [#allocation3], 4
      %s940 = int_to_ptr.vmem [resolvable:$true] %s939
      %942 = dma.vmem_to_hbm [thread:$0]  %s940, 16, %s4, [#allocation4]
    $region21: #{tpu_custom_call.1} parent=1 // pred_fallthru
      _
    // Predicated region
    $region22: #{tpu_custom_call.1} parent=1 // pred_check
      _
    $region23: #{tpu_custom_call.1} parent=1 // pred_check_branch
      %944 = sbr.rel (0) target = $region25
    $region24: #{tpu_custom_call.1} parent=1 // pred_region
      %945 = dma.done [#allocation4], 16
    $region25: #{tpu_custom_call.1} parent=1 // pred_fallthru
      _
    %946 = vsyncpa [#allocation4], 1

</llo_original>
